<compile_context>
chip_gen: v5e
topology: v5e:2x2
jax: 0.10.0
libtpu: 0.0.40
codegen_flags: <defaults>
</compile_context>

<pallas_src>
import functools

import numpy as np

import jax
import jax.numpy as jnp
from jax import lax
from jax.experimental import pallas as pl
from jax.experimental.pallas import tpu as pltpu


def _round_up(x, m):
    return (x + m - 1) // m * m


def _vmem_budget_bytes():
    """~75% of physical VMEM (v5e/v6e: 96 MiB, v7x: 48 MiB); conservative fallback."""
    try:
        cap = pltpu.get_tpu_info().vmem_capacity_bytes
        return int(cap) * 3 // 4
    except Exception:
        return 48 * 1024 * 1024


# ----------------------------------------------------------------------------
# Kernel 1: xw_cat = [ x1 @ W | x2 @ W ]   (bf16 MXU matmul, f32 k-accumulation)
# ----------------------------------------------------------------------------
def _xw_kernel(x1_ref, x2_ref, w_ref, out_ref, acc_ref, *, hp):
    k = pl.program_id(1)

    @pl.when(k == 0)
    def _():
        acc_ref[...] = jnp.zeros_like(acc_ref)

    w = w_ref[...]                                   # bf16, cast done in wrapper
    acc_ref[:, :hp] += jnp.dot(x1_ref[...], w, preferred_element_type=jnp.float32)
    acc_ref[:, hp:] += jnp.dot(x2_ref[...], w, preferred_element_type=jnp.float32)

    @pl.when(k == pl.num_programs(1) - 1)
    def _():
        out_ref[...] = acc_ref[...].astype(out_ref.dtype)


# ----------------------------------------------------------------------------
# Kernel 2: h_cat = relu(adj @ xw_cat + b), accumulating directly into the
#           resident f32 output block (no scratch copy).
# ----------------------------------------------------------------------------
def _adj_gcn_kernel(adj_ref, xw_ref, b_ref, out_ref):
    k = pl.program_id(1)

    @pl.when(k == 0)
    def _():
        out_ref[...] = jnp.zeros_like(out_ref)

    out_ref[...] += jnp.dot(adj_ref[...], xw_ref[...],
                            preferred_element_type=jnp.float32)

    @pl.when(k == pl.num_programs(1) - 1)
    def _():
        out_ref[...] = jnp.maximum(out_ref[...] + b_ref[...], 0.0)


def gcn_forward_fused(feats, shuf_feats, adj, w, b):
    """Returns h_cat (Np, 2*Hp) f32, [:, :Hp]=h_1, [:, Hp:]=h_2 (rows >= N are junk)."""
    N, F = feats.shape
    H = w.shape[1]
    Np = _round_up(max(N, 1), 512)       # 512-aligned: >=256 tiles, >=2 row tiles (v7x)
    Fp = _round_up(F, 128)
    Hp = _round_up(max(H, 128), 128)
    Hc = 2 * Hp

    # bf16 streaming operands built once in the wrapper (zero padding keeps sums exact)
    x1 = jnp.zeros((Np, Fp), jnp.bfloat16).at[:N, :F].set(feats.astype(jnp.bfloat16))
    x2 = jnp.zeros((Np, Fp), jnp.bfloat16).at[:N, :F].set(shuf_feats.astype(jnp.bfloat16))
    adj_p = jnp.zeros((Np, Np), jnp.bfloat16).at[:N, :N].set(adj.astype(jnp.bfloat16))
    w_p = jnp.zeros((Fp, Hp), jnp.bfloat16).at[:F, :H].set(w.astype(jnp.bfloat16))
    b_p = jnp.zeros((1, Hp), jnp.float32).at[:, :H].set(b)
    b_cat = jnp.concatenate([b_p, b_p], axis=1)                       # (1, Hc) f32

    budget = _vmem_budget_bytes()

    # TODO(synk): if the caller guarantees shuf_feats is a row permutation of feats,
    # xw2 could be a cheap (Np, Hp) gather of xw1 instead of the second matmul.

    # ---- stage 1: xw_cat = [x1 @ W | x2 @ W]  (row tiles parallel, Fp k-tiled) ----
    tmx = 256
    tkx = 512 if Fp % 512 == 0 else (256 if Fp % 256 == 0 else 128)
    s1_flops = 2 * 2 * Np * Fp * Hp
    s1_bytes = 2 * Np * Fp * 2 + Fp * Hp * 2 + Np * Hc * 2
    xw_cat = pl.pallas_call(
        functools.partial(_xw_kernel, hp=Hp),
        out_shape=jax.ShapeDtypeStruct((Np, Hc), jnp.bfloat16),
        grid=(Np // tmx, Fp // tkx),
        in_specs=[
            pl.BlockSpec((tmx, tkx), lambda i, k: (i, k)),
            pl.BlockSpec((tmx, tkx), lambda i, k: (i, k)),
            pl.BlockSpec((tkx, Hp), lambda i, k: (k, 0)),
        ],
        out_specs=pl.BlockSpec((tmx, Hc), lambda i, k: (i, 0)),
        scratch_shapes=[pltpu.VMEM((tmx, Hc), jnp.float32)],
        compiler_params=pltpu.CompilerParams(
            dimension_semantics=("parallel", "arbitrary"),
            vmem_limit_bytes=budget),
        cost_estimate=pl.CostEstimate(flops=int(s1_flops), transcendentals=0,
                                      bytes_accessed=int(s1_bytes)),
    )(x1, x2, w_p)

    # ---- stage 2: h_cat = relu(adj @ xw_cat + b) ----
    tm = 256

    def s2_vmem(tk):
        return (2 * tm * tk * 2          # adj tiles (bf16, double-buffered)
                + 2 * tk * Hc * 2        # xw tiles (bf16, double-buffered worst case)
                + 2 * tm * Hc * 4        # out tiles (f32)
                + 2 * Hc * 4)            # bias

    # Prefer tk == Np: xw_cat block index is then constant, so it is DMA'd once and
    # stays VMEM-resident for every row tile (no re-streaming).  Fall back to the
    # largest aligned tk that fits the per-chip budget.
    tk = 256
    for cand in (Np, 1024, 512, 256):
        if cand <= Np and Np % cand == 0 and s2_vmem(cand) <= budget:
            tk = cand
            break

    s2_flops = 2 * Np * Np * Hc
    s2_bytes = Np * Np * 2 + Np * Hc * 2 + Np * Hc * 4 + Hc * 4
    h_cat = pl.pallas_call(
        _adj_gcn_kernel,
        out_shape=jax.ShapeDtypeStruct((Np, Hc), jnp.float32),
        grid=(Np // tm, Np // tk),
        in_specs=[
            pl.BlockSpec((tm, tk), lambda i, k: (i, k)),   # adj tile (bf16)
            pl.BlockSpec((tk, Hc), lambda i, k: (k, 0)),   # xw_cat (resident if tk==Np)
            pl.BlockSpec((1, Hc), lambda i, k: (0, 0)),    # bias (f32, resident)
        ],
        out_specs=pl.BlockSpec((tm, Hc), lambda i, k: (i, 0)),
        compiler_params=pltpu.CompilerParams(
            dimension_semantics=("parallel", "arbitrary"),
            vmem_limit_bytes=budget),
        cost_estimate=pl.CostEstimate(flops=int(s2_flops), transcendentals=0,
                                      bytes_accessed=int(s2_bytes)),
    )(adj_p, xw_cat, b_cat)

    return h_cat, Hp


# ----------------------------------------------------------------------------
# Kernel 3: per-cluster AvgReadout -> sigmoid -> bilinear -> BCE, grid=(C,).
# h_cat stays in HBM (pl.ANY); each cluster's rows are gathered with per-row
# async DMAs into a VMEM scratch (no jnp.take round trip).
# ----------------------------------------------------------------------------
def _disc_kernel(counts_ref, idx_ref, bd_ref, hcat_ref, wd_ref, loss_ref,
                 buf_ref, sem, *, hp, n_maxp):
    c_idx = pl.program_id(0)
    n_valid = counts_ref[c_idx]                               # SMEM scalar (cluster size)
    base = c_idx * n_maxp

    # -- in-kernel row gather: start all row DMAs, then wait for all of them --
    @pl.loop(0, n_maxp)
    def _start(r):
        row = idx_ref[base + r]                               # padded slots point at row 0
        pltpu.make_async_copy(hcat_ref.at[pl.ds(row, 1), :],
                              buf_ref.at[pl.ds(r, 1), :],
                              sem.at[0]).start()

    @pl.loop(0, n_maxp)
    def _wait(r):
        pltpu.make_async_copy(hcat_ref.at[pl.ds(0, 1), :],
                              buf_ref.at[pl.ds(r, 1), :],
                              sem.at[0]).wait()

    # TODO(synk): for very large n_maxp, chunk the row axis (two-pass masked sums)
    # to bound vreg live ranges and overlap the gather with compute.
    hb = buf_ref[...]                                         # (n_maxp, 2*hp) f32
    h1 = hb[:, :hp]                                           # positive block
    h2 = hb[:, hp:]                                           # shuffled block

    row_ids = lax.broadcasted_iota(jnp.int32, (n_maxp, 1), 0)
    mask = (row_ids < n_valid).astype(jnp.float32)            # (n_maxp, 1) validity mask
    inv_n = 1.0 / jnp.maximum(n_valid, 1).astype(jnp.float32) # guard empty cluster

    # AvgReadout over the valid rows (msk=None) + sigmoid -> summary vector (1, hp)
    c_vec = jax.nn.sigmoid(jnp.sum(h1 * mask, axis=0, keepdims=True) * inv_n)

    # nn.Bilinear(H, H, 1): u[i] = sum_k W[i,k] * c[k];  score[j] = h[j] . u + bias
    u = lax.dot_general(c_vec, wd_ref[...],
                        dimension_numbers=(((1,), (1,)), ((), ())),
                        preferred_element_type=jnp.float32)    # (1, hp)
    bias = bd_ref[0]                                           # SMEM f32 scalar

    sc1 = jnp.sum(h1 * u, axis=1, keepdims=True) + bias        # (n_maxp, 1), labels = 1
    sc2 = jnp.sum(h2 * u, axis=1, keepdims=True) + bias        # (n_maxp, 1), labels = 0

    # stable BCEWithLogits:  base = max(x,0) + log1p(exp(-|x|));  y=1: base - x;  y=0: base
    base1 = jnp.maximum(sc1, 0.0) + jnp.log1p(jnp.exp(-jnp.abs(sc1)))
    base2 = jnp.maximum(sc2, 0.0) + jnp.log1p(jnp.exp(-jnp.abs(sc2)))
    per_row = (base1 - sc1) + base2                            # (n_maxp, 1)

    loss = jnp.sum(per_row * mask) * (0.5 * inv_n)             # mean over 2*n_valid logits
    loss_ref[...] = jnp.full(loss_ref.shape, loss, dtype=jnp.float32)


def disc_losses(h_cat, idx_pad, counts, w_disc, b_disc, hp):
    C, n_maxp = idx_pad.shape
    Hc = h_cat.shape[1]
    Hd = w_disc.shape[0]

    wd_p = jnp.zeros((hp, hp), jnp.float32).at[:Hd, :Hd].set(w_disc)
    idx_flat = idx_pad.reshape(-1).astype(jnp.int32)           # 1-D SMEM (avoids 2-D padding)
    bd = b_disc.reshape(-1)[:1].astype(jnp.float32)            # (1,) f32 -> SMEM

    losses = pl.pallas_call(
        functools.partial(_disc_kernel, hp=hp, n_maxp=n_maxp),
        out_shape=jax.ShapeDtypeStruct((C, 8, 128), jnp.float32),   # lane/sublane-dense
        grid_spec=pltpu.PrefetchScalarGridSpec(
            num_scalar_prefetch=3,                                  # counts, idx, bias -> SMEM
            grid=(C,),
            in_specs=[
                pl.BlockSpec(memory_space=pl.ANY),                  # h_cat stays in HBM
                pl.BlockSpec((hp, hp), lambda c, cnt, idx, bd: (0, 0)),  # w_disc resident
            ],
            out_specs=pl.BlockSpec((1, 8, 128), lambda c, cnt, idx, bd: (c, 0, 0)),
            scratch_shapes=[
                pltpu.VMEM((n_maxp, Hc), jnp.float32),              # gathered cluster block
                pltpu.SemaphoreType.DMA((1,)),
            ]),
        compiler_params=pltpu.CompilerParams(
            dimension_semantics=("parallel",)),
    )(counts, idx_flat, bd, h_cat, wd_p)
    return losses[:, 0, 0]


# ----------------------------------------------------------------------------
# U_DCI forward (glue: padding, cluster packing, final average)
# ----------------------------------------------------------------------------
def u_dci_forward(params, feats, shuf_feats, adj, cluster_info):
    h_cat, hp = gcn_forward_fused(feats, shuf_feats, adj,
                                  params["w_gcn"], params["b_gcn"])

    # pack clusters to a common, sublane-aligned size with a validity count (numpy:
    # no O(C) trace-time .at[].set chain)
    C = len(cluster_info)
    counts_np = np.array([len(ix) for ix in cluster_info], dtype=np.int32)
    n_max = int(counts_np.max())
    n_maxp = _round_up(max(n_max, 8), 8)
    idx_np = np.zeros((C, n_maxp), dtype=np.int32)
    for i, ix in enumerate(cluster_info):
        idx_np[i, :len(ix)] = np.asarray(ix, dtype=np.int32)

    losses = disc_losses(h_cat, jnp.asarray(idx_np), jnp.asarray(counts_np),
                         params["w_disc"], params["b_disc"], hp)
    return jnp.mean(losses)


# Pure-JAX reference (matmul_dtype lets us emulate the kernel's bf16 MXU path).
def u_dci_reference(params, feats, shuf_feats, adj, cluster_info,
                    matmul_dtype=jnp.float32):
    w, b = params["w_gcn"], params["b_gcn"]

    def gcn(x):
        xw = jnp.dot(x.astype(matmul_dtype), w.astype(matmul_dtype),
                     preferred_element_type=jnp.float32).astype(matmul_dtype)
        h = jnp.dot(adj.astype(matmul_dtype), xw,
                    preferred_element_type=jnp.float32) + b
        return jnp.maximum(h, 0.0)

    h1, h2 = gcn(feats), gcn(shuf_feats)
    losses = []
    for idx in cluster_info:
        hb1, hb2 = h1[idx], h2[idx]
        c = jax.nn.sigmoid(jnp.mean(hb1, axis=0))
        t = params["w_disc"] @ c
        sc1 = hb1 @ t + params["b_disc"][0, 0]
        sc2 = hb2 @ t + params["b_disc"][0, 0]
        logits = jnp.concatenate([sc1, sc2])
        labels = jnp.concatenate([jnp.ones_like(sc1), jnp.zeros_like(sc2)])
        l = jnp.mean(jnp.maximum(logits, 0.0) - logits * labels
                     + jnp.log1p(jnp.exp(-jnp.abs(logits))))
        losses.append(l)
    return sum(losses) / float(len(cluster_info))


if __name__ == "__main__":
    N, F, H = 16, 8, 32          # nodes, input feature dim, hidden dim
    key = jax.random.PRNGKey(0)
    k_feat, k_perm, k_adj, k_wg, k_bg, k_wd, k_bd = jax.random.split(key, 7)

    feats = jax.random.normal(k_feat, (N, F), dtype=jnp.float32)
    perm = jax.random.permutation(k_perm, N)
    shuf_feats = feats[perm]                                   # row-shuffled features

    # symmetric, self-loop, row-normalised dense adjacency
    a = jax.random.uniform(k_adj, (N, N), dtype=jnp.float32)
    a = (a + a.T) * 0.5 + jnp.eye(N, dtype=jnp.float32)
    adj = a / jnp.sum(a, axis=1, keepdims=True)

    params = {
        "w_gcn": 0.1 * jax.random.normal(k_wg, (F, H), dtype=jnp.float32),
        "b_gcn": 0.1 * jax.random.normal(k_bg, (1, H), dtype=jnp.float32),
        "w_disc": 0.1 * jax.random.normal(k_wd, (H, H), dtype=jnp.float32),  # nn.Bilinear(H,H,1) weight
        "b_disc": 0.1 * jax.random.normal(k_bd, (1, 1), dtype=jnp.float32),  # nn.Bilinear bias
    }

    # cluster_info: two clusters of 8 nodes (msk=None, samp_bias1/2=None)
    cluster_info = [jnp.arange(0, N, 2, dtype=jnp.int32),
                    jnp.arange(1, N, 2, dtype=jnp.int32)]

    loss = u_dci_forward(params, feats, shuf_feats, adj, cluster_info)
    loss = jax.block_until_ready(loss)

    # tight check against a reference using the same bf16-matmul / f32-accumulate path
    ref_bf16 = u_dci_reference(params, feats, shuf_feats, adj, cluster_info,
                               matmul_dtype=jnp.bfloat16)
    # sanity check against the full-f32 reference (looser: bf16 input rounding)
    ref_f32 = u_dci_reference(params, feats, shuf_feats, adj, cluster_info,
                              matmul_dtype=jnp.float32)

    assert jnp.allclose(loss, ref_bf16, atol=1e-3, rtol=1e-3), (loss, ref_bf16)
    assert jnp.allclose(loss, ref_f32, atol=5e-2, rtol=5e-2), (loss, ref_f32)

    print("KERNEL_OK")
</pallas_src>

<mosaic_0001>
module attributes {stable_mosaic.version = 11 : i64} {
  func.func @_xw_kernel(%arg0: i32, %arg1: i32, %arg2: memref<256x128xbf16, #tpu.memory_space<vmem>>, %arg3: memref<256x128xbf16, #tpu.memory_space<vmem>>, %arg4: memref<128x128xbf16, #tpu.memory_space<vmem>>, %arg5: memref<256x256xbf16, #tpu.memory_space<vmem>>, %arg6: memref<256x256xf32, #tpu.memory_space<vmem>>) attributes {dimension_semantics = [#tpu.dimension_semantics<parallel>, #tpu.dimension_semantics<arbitrary>], iteration_bounds = array<i64: 2, 1>, scalar_prefetch = 0 : i64, scratch_operands = 1 : i64, tpu.core_type = #tpu.core_type<tc>, window_params = [{transform_indices = @transform_0, window_bounds = array<i64: 256, 128>}, {transform_indices = @transform_1, window_bounds = array<i64: 256, 128>}, {transform_indices = @transform_2, window_bounds = array<i64: 128, 128>}, {transform_indices = @transform_3, window_bounds = array<i64: 256, 256>}]} {
    %c0_i32 = arith.constant 0 : i32
    %0 = arith.cmpi eq, %arg1, %c0_i32 : i32
    %1 = arith.extui %0 : i1 to i32
    %c0_i32_0 = arith.constant 0 : i32
    %2 = arith.cmpi ne, %1, %c0_i32_0 : i32
    scf.if %2 {
      %cst_16 = arith.constant 0.000000e+00 : f32
      %17 = vector.broadcast %cst_16 : f32 to vector<256x256xf32>
      %c0_17 = arith.constant 0 : index
      %c0_18 = arith.constant 0 : index
      %18 = vector.load %arg6[%c0_17, %c0_18] : memref<256x256xf32, #tpu.memory_space<vmem>>, vector<256x256xf32>
      tpu.vector_store %arg6[%c0_17, %c0_18], %17 {strides = array<i32>} : memref<256x256xf32, #tpu.memory_space<vmem>>, vector<256x256xf32>,
    } else {
    }
    %c0 = arith.constant 0 : index
    %c0_1 = arith.constant 0 : index
    %3 = vector.load %arg4[%c0, %c0_1] : memref<128x128xbf16, #tpu.memory_space<vmem>>, vector<128x128xbf16>
    %c0_2 = arith.constant 0 : index
    %c0_3 = arith.constant 0 : index
    %4 = vector.load %arg6[%c0_2, %c0_3] : memref<256x256xf32, #tpu.memory_space<vmem>>, vector<256x128xf32>
    %c0_4 = arith.constant 0 : index
    %c0_5 = arith.constant 0 : index
    %5 = vector.load %arg2[%c0_4, %c0_5] : memref<256x128xbf16, #tpu.memory_space<vmem>>, vector<256x128xbf16>
    %cst = arith.constant dense<0.000000e+00> : vector<256x128xf32>
    %6 = tpu.matmul %5, %3, %cst {dimension_numbers = #tpu.dot_dimension_numbers<[1], [0], [0], [1], [0, 0, 1, 1], [], []>} : vector<256x128xbf16>, vector<128x128xbf16>, vector<256x128xf32> -> vector<256x128xf32>
    %7 = arith.addf %4, %6 : vector<256x128xf32>
    %c0_6 = arith.constant 0 : index
    %c0_7 = arith.constant 0 : index
    %8 = vector.load %arg6[%c0_6, %c0_7] : memref<256x256xf32, #tpu.memory_space<vmem>>, vector<256x128xf32>
    tpu.vector_store %arg6[%c0_6, %c0_7], %7 {strides = array<i32>} : memref<256x256xf32, #tpu.memory_space<vmem>>, vector<256x128xf32>,
    %c0_8 = arith.constant 0 : index
    %c128 = arith.constant 128 : index
    %9 = vector.load %arg6[%c0_8, %c128] : memref<256x256xf32, #tpu.memory_space<vmem>>, vector<256x128xf32>
    %c0_9 = arith.constant 0 : index
    %c0_10 = arith.constant 0 : index
    %10 = vector.load %arg3[%c0_9, %c0_10] : memref<256x128xbf16, #tpu.memory_space<vmem>>, vector<256x128xbf16>
    %cst_11 = arith.constant dense<0.000000e+00> : vector<256x128xf32>
    %11 = tpu.matmul %10, %3, %cst_11 {dimension_numbers = #tpu.dot_dimension_numbers<[1], [0], [0], [1], [0, 0, 1, 1], [], []>} : vector<256x128xbf16>, vector<128x128xbf16>, vector<256x128xf32> -> vector<256x128xf32>
    %12 = arith.addf %9, %11 : vector<256x128xf32>
    %c0_12 = arith.constant 0 : index
    %c128_13 = arith.constant 128 : index
    %13 = vector.load %arg6[%c0_12, %c128_13] : memref<256x256xf32, #tpu.memory_space<vmem>>, vector<256x128xf32>
    tpu.vector_store %arg6[%c0_12, %c128_13], %12 {strides = array<i32>} : memref<256x256xf32, #tpu.memory_space<vmem>>, vector<256x128xf32>,
    %c0_i32_14 = arith.constant 0 : i32
    %14 = arith.cmpi eq, %arg1, %c0_i32_14 : i32
    %15 = arith.extui %14 : i1 to i32
    %c0_i32_15 = arith.constant 0 : i32
    %16 = arith.cmpi ne, %15, %c0_i32_15 : i32
    scf.if %16 {
      %c0_16 = arith.constant 0 : index
      %c0_17 = arith.constant 0 : index
      %17 = vector.load %arg6[%c0_16, %c0_17] : memref<256x256xf32, #tpu.memory_space<vmem>>, vector<256x256xf32>
      %18 = arith.truncf %17 : vector<256x256xf32> to vector<256x256xbf16>
      %c0_18 = arith.constant 0 : index
      %c0_19 = arith.constant 0 : index
      %19 = vector.load %arg5[%c0_18, %c0_19] : memref<256x256xbf16, #tpu.memory_space<vmem>>, vector<256x256xbf16>
      tpu.vector_store %arg5[%c0_18, %c0_19], %18 {strides = array<i32>} : memref<256x256xbf16, #tpu.memory_space<vmem>>, vector<256x256xbf16>,
    } else {
    }
    return
  }
  func.func @transform_0(%arg0: i32, %arg1: i32) -> (i32, i32) {
    %c0_i32 = arith.constant 0 : i32
    return %arg0, %arg1 : i32, i32
  }
  func.func @transform_1(%arg0: i32, %arg1: i32) -> (i32, i32) {
    %c0_i32 = arith.constant 0 : i32
    return %arg0, %arg1 : i32, i32
  }
  func.func @transform_2(%arg0: i32, %arg1: i32) -> (i32, i32) {
    %c0_i32 = arith.constant 0 : i32
    %c0_i32_0 = arith.constant 0 : i32
    return %arg1, %c0_i32 : i32, i32
  }
  func.func @transform_3(%arg0: i32, %arg1: i32) -> (i32, i32) {
    %c0_i32 = arith.constant 0 : i32
    %c0_i32_0 = arith.constant 0 : i32
    return %arg0, %c0_i32 : i32, i32
  }
}

</mosaic_0001>

<llo_original>
// kernel: tpu_custom_call.1
$region0: #{tpu_custom_call.1}
  #allocation0 [shape = 'u32[]', space=smem, size = 0x4, offset = 0x4, fixed_abs, tag = 'smem constant byte address 0x4 - core index']
  #allocation1 [shape = 'u32[72,128]{1,0:T(1,128)}', space=vmem, size = 0x9000, scoped, tag = 'internal scratch']
  #allocation2 [shape = 'f32[256,256]{1,0:T(8,128)}', space=vmem, size = 0x40000, scoped, tag = 'scratch operand']
  %s0 = inlined_call_operand.hbm [shape: bf16[512,128], index: 0, kind: input, shape index: {}]
  %s1 = inlined_call_operand.hbm [shape: bf16[512,128], index: 1, kind: input, shape index: {}]
  %s2 = inlined_call_operand.hbm [shape: bf16[128,128], index: 2, kind: input, shape index: {}]
  %s3 = inlined_call_operand.hbm [shape: bf16[512,256], index: 3, kind: output, shape index: {}]
  %s4 = sld [smem:[#allocation0]]
  $region65: #{tpu_custom_call.1} parent=0
    _
  %s6 = ssub.s32 1, %s4
  %s7 = scalar_select 0, %s6, %s4
  $region1: #{tpu_custom_call.1} parent=0
    #allocation3 [shape = 'u8[131072]{0}', space=vmem, size = 0x20000, scoped, tag = 'input window, operand 0']
    #allocation4 [shape = 's32[2]{0}', space=sflag, size = 0x8, scoped, tag = 'scoped memory for tpu_custom_call.1']
    #allocation5 [shape = 's32[2]{0}', space=sflag, size = 0x8, scoped, tag = 'scoped memory for tpu_custom_call.1']
    #allocation6 [shape = 'u8[131072]{0}', space=vmem, size = 0x20000, scoped, tag = 'input window, operand 1']
    #allocation7 [shape = 's32[2]{0}', space=sflag, size = 0x8, scoped, tag = 'scoped memory for tpu_custom_call.1']
    #allocation8 [shape = 'u8[32768]{0}', space=vmem, size = 0x8000, scoped, tag = 'input window, operand 2, single buffered']
    #allocation9 [shape = 'u8[262144]{0}', space=vmem, size = 0x40000, scoped, tag = 'output window, operand 0']
    %8 = vsyncpa [#allocation4], 0
    %s9 = scalar_lea.sflag [#allocation4], 1
    %10 = vsyncpa %s9, 0
    %11 = vsyncpa [#allocation7], 0
    %s12 = scalar_lea.sflag [#allocation7], 1
    %13 = vsyncpa %s12, 0
    %14 = vsyncpa [#allocation5], 0
    %s15 = scalar_lea.sflag [#allocation5], 1
    %16 = vsyncpa %s15, 0
    loop: start=0, step=1, limit=4
    $region2: #{tpu_custom_call.1} parent=1 // loop_pre_header
      _
    $region3: #{tpu_custom_call.1} parent=1 // loop_header
      %s18 = sphi 0, %s22
      %p19 = scmp.ge.s32.totalorder %s18, 4
      %s25 = sphi 0, %s37
      %s26 = sphi 0, %s33
      %s27 = sphi 0, %s25
      %s28 = sphi 0, %s26
      %s29 = sphi 0, %s27
      %s30 = sphi 0, %s28
      %s42 = sphi 0, %s44
      %s45 = sphi 0, %s42
      %s46 = sphi 0, %s45
      %s62 = sphi 0, %s46
      %s70 = sphi 0, %s72
      %s73 = sphi 0, %s70
      %s74 = sphi 0, %s73
      %s90 = sphi 0, %s74
      %s96 = sphi 0, %s98
      %s99 = sphi 0, %s96
      %s100 = sphi 0, %s99
      %s116 = sphi 0, %s100
      %s122 = sphi 0, %s124
      %s125 = sphi 0, %s122
      %s126 = sphi 0, %s125
      %s142 = sphi 0, %s126
    $region4: #{tpu_custom_call.1} parent=1 // loop_header_branch
      %21 = sbr.rel (%p19) target = $region8
    $region5: #{tpu_custom_call.1} parent=1 // loop_body
      %s23 = ssub.s32 %s18, 1
      %s24 = ssub.s32 %s18, 2
      %s31 = sadd.s32 1, %s26
      %p32 = scmp.ge.s32.totalorder %s31, 1
      %s33 = scalar_select %p32, 0, %s31
      %s34 = sadd.s32 1, %s25
      %s35 = scalar_select %p32, %s34, %s25
      %p36 = scmp.ge.s32.totalorder %s35, 2
      %s37 = scalar_select %p36, 0, %s35
      %s38 = ssub.s32 %s25, %s37
      %s39 = ssub.s32 %s26, %s33
      %s40 = sor.u32 %s38, %s39
      %p41 = scmp.eq.s32.totalorder %s40, 0
      %s43 = sadd.s32 %s42, 1
      %s44 = scalar_select %p41, %s42, %s43
      %p47 = pneg %p41
      %p48 = scmp.eq.s32.totalorder %s18, 1
      %p49 = por %p47, %p48
      %p50 = scmp.ne.s32.totalorder %s42, %s45
      %p51 = scmp.eq.s32.totalorder %s18, 0
      %p52 = por %p50, %p51
      %p53 = scmp.ne.s32.totalorder %s42, %s45
      %p54 = scmp.eq.s32.totalorder %s23, 1
      %p55 = por %p53, %p54
      %p56 = scmp.ne.s32.totalorder %s45, %s46
      %p57 = scmp.eq.s32.totalorder %s23, 0
      %p58 = por %p56, %p57
      %p59 = scmp.ne.s32.totalorder %s45, %s46
      %p60 = scmp.eq.s32.totalorder %s24, 1
      %p61 = por %p59, %p60
      %p63 = scmp.ne.s32.totalorder %s46, %s62
      %p64 = scmp.eq.s32.totalorder %s24, 0
      %p65 = por %p63, %p64
      %s66 = ssub.s32 %s25, %s37
      %s67 = ssub.s32 %s26, %s33
      %s68 = sor.u32 %s66, %s67
      %p69 = scmp.eq.s32.totalorder %s68, 0
      %s71 = sadd.s32 %s70, 1
      %s72 = scalar_select %p69, %s70, %s71
      %p75 = pneg %p69
      %p76 = scmp.eq.s32.totalorder %s18, 1
      %p77 = por %p75, %p76
      %p78 = scmp.ne.s32.totalorder %s70, %s73
      %p79 = scmp.eq.s32.totalorder %s18, 0
      %p80 = por %p78, %p79
      %p81 = scmp.ne.s32.totalorder %s70, %s73
      %p82 = scmp.eq.s32.totalorder %s23, 1
      %p83 = por %p81, %p82
      %p84 = scmp.ne.s32.totalorder %s73, %s74
      %p85 = scmp.eq.s32.totalorder %s23, 0
      %p86 = por %p84, %p85
      %p87 = scmp.ne.s32.totalorder %s73, %s74
      %p88 = scmp.eq.s32.totalorder %s24, 1
      %p89 = por %p87, %p88
      %p91 = scmp.ne.s32.totalorder %s74, %s90
      %p92 = scmp.eq.s32.totalorder %s24, 0
      %p93 = por %p91, %p92
      %s94 = ssub.s32 %s26, %s33
      %p95 = scmp.eq.s32.totalorder %s94, 0
      %s97 = sadd.s32 %s96, 1
      %s98 = scalar_select %p95, %s96, %s97
      %p101 = pneg %p95
      %p102 = scmp.eq.s32.totalorder %s18, 1
      %p103 = por %p101, %p102
      %p104 = scmp.ne.s32.totalorder %s96, %s99
      %p105 = scmp.eq.s32.totalorder %s18, 0
      %p106 = por %p104, %p105
      %p107 = scmp.ne.s32.totalorder %s96, %s99
      %p108 = scmp.eq.s32.totalorder %s23, 1
      %p109 = por %p107, %p108
      %p110 = scmp.ne.s32.totalorder %s99, %s100
      %p111 = scmp.eq.s32.totalorder %s23, 0
      %p112 = por %p110, %p111
      %p113 = scmp.ne.s32.totalorder %s99, %s100
      %p114 = scmp.eq.s32.totalorder %s24, 1
      %p115 = por %p113, %p114
      %p117 = scmp.ne.s32.totalorder %s100, %s116
      %p118 = scmp.eq.s32.totalorder %s24, 0
      %p119 = por %p117, %p118
      %s120 = ssub.s32 %s25, %s37
      %p121 = scmp.eq.s32.totalorder %s120, 0
      %s123 = sadd.s32 %s122, 1
      %s124 = scalar_select %p121, %s122, %s123
      %p127 = pneg %p121
      %p128 = scmp.eq.s32.totalorder %s18, 1
      %p129 = por %p127, %p128
      %p130 = scmp.ne.s32.totalorder %s122, %s125
      %p131 = scmp.eq.s32.totalorder %s18, 0
      %p132 = por %p130, %p131
      %p133 = scmp.ne.s32.totalorder %s122, %s125
      %p134 = scmp.eq.s32.totalorder %s23, 1
      %p135 = por %p133, %p134
      %p136 = scmp.ne.s32.totalorder %s125, %s126
      %p137 = scmp.eq.s32.totalorder %s23, 0
      %p138 = por %p136, %p137
      %p139 = scmp.ne.s32.totalorder %s125, %s126
      %p140 = scmp.eq.s32.totalorder %s24, 1
      %p141 = por %p139, %p140
      %p143 = scmp.ne.s32.totalorder %s126, %s142
      %p144 = scmp.eq.s32.totalorder %s24, 0
      %p145 = por %p143, %p144
      %p146 = scmp.le.s32.totalorder 1, %s18
      %p147 = scmp.lt.s32.totalorder %s18, 3
      %p148 = pnand %p146, %p147
      %p149 = pneg %p148
      // Predicated region
      $region9: #{tpu_custom_call.1} parent=5 // pred_check
        _
      $region10: #{tpu_custom_call.1} parent=5 // pred_check_branch
        %151 = sbr.rel (%p148) target = $region12
      $region11: #{tpu_custom_call.1} parent=5 // pred_region
        %s152 = ssub.s32 %s18, 1
        // Predicated region
        $region13: #{tpu_custom_call.1} parent=11 // pred_check
          %p153 = pneg %p112
        $region14: #{tpu_custom_call.1} parent=11 // pred_check_branch
          %155 = sbr.rel (%p153) target = $region16
        $region15: #{tpu_custom_call.1} parent=11 // pred_region
          %s156 = smul.u32 16, %s28
          %158 = vsyncadd [#allocation7], 0
          %s159 = smul.addr %s156, 4
          %s160 = scalar_lea.hbm %s2, %s159
          %s161 = sshll.u32 %s160, 4
          %s162 = int_to_ptr.hbm [resolvable:$true] %s161
          %s163 = sshll.u32 [#allocation8], 4
          %s164 = int_to_ptr.vmem [resolvable:$true] %s163
          %169 = dma.hbm_to_vmem [thread:$0]  %s162, 1024, %s164, [#allocation7], 64, 64, 4
        $region16: #{tpu_custom_call.1} parent=11 // pred_fallthru
          _
      $region12: #{tpu_custom_call.1} parent=5 // pred_fallthru
        _
      %p170 = scmp.lt.s32.totalorder %s18, 2
      // Predicated region
      $region17: #{tpu_custom_call.1} parent=5 // pred_check
        %p171 = pneg %p170
      $region18: #{tpu_custom_call.1} parent=5 // pred_check_branch
        %173 = sbr.rel (%p171) target = $region20
      $region19: #{tpu_custom_call.1} parent=5 // pred_region
        // Predicated region
        $region21: #{tpu_custom_call.1} parent=19 // pred_check
          %p174 = pneg %p52
        $region22: #{tpu_custom_call.1} parent=19 // pred_check_branch
          %176 = sbr.rel (%p174) target = $region24
        $region23: #{tpu_custom_call.1} parent=19 // pred_region
          %s177 = sand.u32 %s42, 1
          %s178 = scalar_lea.sflag [#allocation4], %s177
          %s179 = sand.u32 %s42, 1
          %s180 = smul.addr %s179, 128
          %s181 = scalar_lea.vmem [#allocation3], %s180
          %s182 = smul.u32 32, %s25
          %184 = vsyncadd %s178, 0
          %s185 = sadd.s32 %s26, %s182
          %s186 = smul.addr %s185, 4
          %s187 = scalar_lea.hbm %s0, %s186
          %s188 = sshll.u32 %s187, 4
          %s189 = int_to_ptr.hbm [resolvable:$true] %s188
          %s190 = sshll.u32 %s181, 4
          %s191 = int_to_ptr.vmem [resolvable:$true] %s190
          %196 = dma.hbm_to_vmem [thread:$0]  %s189, 2048, %s191, %s178, 64, 64, 4
        $region24: #{tpu_custom_call.1} parent=19 // pred_fallthru
          _
        // Predicated region
        $region25: #{tpu_custom_call.1} parent=19 // pred_check
          %p197 = pneg %p80
        $region26: #{tpu_custom_call.1} parent=19 // pred_check_branch
          %199 = sbr.rel (%p197) target = $region28
        $region27: #{tpu_custom_call.1} parent=19 // pred_region
          %s200 = sand.u32 %s18, 1
          %s201 = scalar_lea.sflag [#allocation7], %s200
          %s202 = sand.u32 %s70, 1
          %s203 = smul.addr %s202, 128
          %s204 = scalar_lea.vmem [#allocation6], %s203
          %s205 = smul.u32 32, %s25
          %207 = vsyncadd %s201, 0
          %s208 = sadd.s32 %s26, %s205
          %s209 = smul.addr %s208, 4
          %s210 = scalar_lea.hbm %s1, %s209
          %s211 = sshll.u32 %s210, 4
          %s212 = int_to_ptr.hbm [resolvable:$true] %s211
          %s213 = sshll.u32 %s204, 4
          %s214 = int_to_ptr.vmem [resolvable:$true] %s213
          %219 = dma.hbm_to_vmem [thread:$0]  %s212, 2048, %s214, %s201, 64, 64, 4
        $region28: #{tpu_custom_call.1} parent=19 // pred_fallthru
          _
      $region20: #{tpu_custom_call.1} parent=5 // pred_fallthru
        _
      %p220 = scmp.le.s32.totalorder 1, %s18
      %p221 = scmp.lt.s32.totalorder %s18, 3
      %p222 = pnand %p220, %p221
      %p223 = pneg %p222
      // Predicated region
      $region29: #{tpu_custom_call.1} parent=5 // pred_check
        _
      $region30: #{tpu_custom_call.1} parent=5 // pred_check_branch
        %225 = sbr.rel (%p222) target = $region32
      $region31: #{tpu_custom_call.1} parent=5 // pred_region
        %s226 = ssub.s32 %s18, 1
        %s227 = sand.u32 %s45, 1
        %s228 = scalar_lea.sflag [#allocation4], %s227
        %s229 = sand.u32 %s45, 1
        %s230 = smul.addr %s229, 128
        %s231 = scalar_lea.vmem [#allocation3], %s230
        // Predicated region
        $region33: #{tpu_custom_call.1} parent=31 // pred_check
          %p232 = pneg %p58
        $region34: #{tpu_custom_call.1} parent=31 // pred_check_branch
          %234 = sbr.rel (%p232) target = $region36
        $region35: #{tpu_custom_call.1} parent=31 // pred_region
          %236 = dma.done %s228, 2048
        $region36: #{tpu_custom_call.1} parent=31 // pred_fallthru
          _
        %s237 = sand.u32 %s23, 1
        %s238 = scalar_lea.sflag [#allocation7], %s237
        %s239 = sand.u32 %s73, 1
        %s240 = smul.addr %s239, 128
        %s241 = scalar_lea.vmem [#allocation6], %s240
        // Predicated region
        $region37: #{tpu_custom_call.1} parent=31 // pred_check
          %p242 = pneg %p86
        $region38: #{tpu_custom_call.1} parent=31 // pred_check_branch
          %244 = sbr.rel (%p242) target = $region40
        $region39: #{tpu_custom_call.1} parent=31 // pred_region
          %246 = dma.done %s238, 2048
        $region40: #{tpu_custom_call.1} parent=31 // pred_fallthru
          _
        // Predicated region
        $region41: #{tpu_custom_call.1} parent=31 // pred_check
          %p247 = pneg %p112
        $region42: #{tpu_custom_call.1} parent=31 // pred_check_branch
          %249 = sbr.rel (%p247) target = $region44
        $region43: #{tpu_custom_call.1} parent=31 // pred_region
          %251 = dma.done [#allocation7], 1024
        $region44: #{tpu_custom_call.1} parent=31 // pred_fallthru
          _
        %s252 = sand.u32 %s45, 1
        %s253 = scalar_lea.sflag [#allocation4], %s252
        %s254 = sand.u32 %s45, 1
        %s255 = smul.addr %s254, 128
        %s256 = scalar_lea.vmem [#allocation3], %s255
        %p257 = pneg %p58
        %p258 = pneg %p55
        %s259 = sand.u32 %s23, 1
        %s260 = scalar_lea.sflag [#allocation7], %s259
        %s261 = sand.u32 %s73, 1
        %s262 = smul.addr %s261, 128
        %s263 = scalar_lea.vmem [#allocation6], %s262
        %p264 = pneg %p86
        %p265 = pneg %p83
        %p266 = pneg %p112
        %p267 = pneg %p109
        %p268 = pneg %p138
        %p269 = pneg %p135
        %s270 = sand.u32 %s125, 1
        %s271 = scalar_lea.sflag [#allocation5], %s270
        %s272 = sand.u32 %s125, 1
        %s273 = smul.addr %s272, 256
        %s274 = scalar_lea.vmem [#allocation9], %s273
        %s275 = smul.u32 32, %s27
        %s276 = smul.u32 32, %s27
        %s277 = smul.u32 16, %s28
        %s278 = smul.u32 32, %s27
        %p279 = scmp.eq.s32.totalorder %s28, 0
        // Predicated region
        $region45: #{tpu_custom_call.1} parent=31 // pred_check
          %p280 = pneg %p279
        $region46: #{tpu_custom_call.1} parent=31 // pred_check_branch
          %282 = sbr.rel (%p280) target = $region48
        $region47: #{tpu_custom_call.1} parent=31 // pred_region
          %283 = vst [vmem:[#allocation2] sm:$0xff] 0.0
          %284 = vst [vmem:[#allocation2 + $0x8] sm:$0xff] 0.0
          %285 = vst [vmem:[#allocation2 + $0x10] sm:$0xff] 0.0
          %286 = vst [vmem:[#allocation2 + $0x18] sm:$0xff] 0.0
          %287 = vst [vmem:[#allocation2 + $0x20] sm:$0xff] 0.0
          %288 = vst [vmem:[#allocation2 + $0x28] sm:$0xff] 0.0
          %289 = vst [vmem:[#allocation2 + $0x30] sm:$0xff] 0.0
          %290 = vst [vmem:[#allocation2 + $0x38] sm:$0xff] 0.0
          %291 = vst [vmem:[#allocation2 + $0x40] sm:$0xff] 0.0
          %292 = vst [vmem:[#allocation2 + $0x48] sm:$0xff] 0.0
          %293 = vst [vmem:[#allocation2 + $0x50] sm:$0xff] 0.0
          %294 = vst [vmem:[#allocation2 + $0x58] sm:$0xff] 0.0
          %295 = vst [vmem:[#allocation2 + $0x60] sm:$0xff] 0.0
          %296 = vst [vmem:[#allocation2 + $0x68] sm:$0xff] 0.0
          %297 = vst [vmem:[#allocation2 + $0x70] sm:$0xff] 0.0
          %298 = vst [vmem:[#allocation2 + $0x78] sm:$0xff] 0.0
          %299 = vst [vmem:[#allocation2 + $0x80] sm:$0xff] 0.0
          %300 = vst [vmem:[#allocation2 + $0x88] sm:$0xff] 0.0
          %301 = vst [vmem:[#allocation2 + $0x90] sm:$0xff] 0.0
          %302 = vst [vmem:[#allocation2 + $0x98] sm:$0xff] 0.0
          %303 = vst [vmem:[#allocation2 + $0xa0] sm:$0xff] 0.0
          %304 = vst [vmem:[#allocation2 + $0xa8] sm:$0xff] 0.0
          %305 = vst [vmem:[#allocation2 + $0xb0] sm:$0xff] 0.0
          %306 = vst [vmem:[#allocation2 + $0xb8] sm:$0xff] 0.0
          %307 = vst [vmem:[#allocation2 + $0xc0] sm:$0xff] 0.0
          %308 = vst [vmem:[#allocation2 + $0xc8] sm:$0xff] 0.0
          %309 = vst [vmem:[#allocation2 + $0xd0] sm:$0xff] 0.0
          %310 = vst [vmem:[#allocation2 + $0xd8] sm:$0xff] 0.0
          %311 = vst [vmem:[#allocation2 + $0xe0] sm:$0xff] 0.0
          %312 = vst [vmem:[#allocation2 + $0xe8] sm:$0xff] 0.0
          %313 = vst [vmem:[#allocation2 + $0xf0] sm:$0xff] 0.0
          %314 = vst [vmem:[#allocation2 + $0xf8] sm:$0xff] 0.0
          %315 = vst [vmem:[#allocation2 + $0x100] sm:$0xff] 0.0
          %316 = vst [vmem:[#allocation2 + $0x108] sm:$0xff] 0.0
          %317 = vst [vmem:[#allocation2 + $0x110] sm:$0xff] 0.0
          %318 = vst [vmem:[#allocation2 + $0x118] sm:$0xff] 0.0
          %319 = vst [vmem:[#allocation2 + $0x120] sm:$0xff] 0.0
          %320 = vst [vmem:[#allocation2 + $0x128] sm:$0xff] 0.0
          %321 = vst [vmem:[#allocation2 + $0x130] sm:$0xff] 0.0
          %322 = vst [vmem:[#allocation2 + $0x138] sm:$0xff] 0.0
          %323 = vst [vmem:[#allocation2 + $0x140] sm:$0xff] 0.0
          %324 = vst [vmem:[#allocation2 + $0x148] sm:$0xff] 0.0
          %325 = vst [vmem:[#allocation2 + $0x150] sm:$0xff] 0.0
          %326 = vst [vmem:[#allocation2 + $0x158] sm:$0xff] 0.0
          %327 = vst [vmem:[#allocation2 + $0x160] sm:$0xff] 0.0
          %328 = vst [vmem:[#allocation2 + $0x168] sm:$0xff] 0.0
          %329 = vst [vmem:[#allocation2 + $0x170] sm:$0xff] 0.0
          %330 = vst [vmem:[#allocation2 + $0x178] sm:$0xff] 0.0
          %331 = vst [vmem:[#allocation2 + $0x180] sm:$0xff] 0.0
          %332 = vst [vmem:[#allocation2 + $0x188] sm:$0xff] 0.0
          %333 = vst [vmem:[#allocation2 + $0x190] sm:$0xff] 0.0
          %334 = vst [vmem:[#allocation2 + $0x198] sm:$0xff] 0.0
          %335 = vst [vmem:[#allocation2 + $0x1a0] sm:$0xff] 0.0
          %336 = vst [vmem:[#allocation2 + $0x1a8] sm:$0xff] 0.0
          %337 = vst [vmem:[#allocation2 + $0x1b0] sm:$0xff] 0.0
          %338 = vst [vmem:[#allocation2 + $0x1b8] sm:$0xff] 0.0
          %339 = vst [vmem:[#allocation2 + $0x1c0] sm:$0xff] 0.0
          %340 = vst [vmem:[#allocation2 + $0x1c8] sm:$0xff] 0.0
          %341 = vst [vmem:[#allocation2 + $0x1d0] sm:$0xff] 0.0
          %342 = vst [vmem:[#allocation2 + $0x1d8] sm:$0xff] 0.0
          %343 = vst [vmem:[#allocation2 + $0x1e0] sm:$0xff] 0.0
          %344 = vst [vmem:[#allocation2 + $0x1e8] sm:$0xff] 0.0
          %345 = vst [vmem:[#allocation2 + $0x1f0] sm:$0xff] 0.0
          %346 = vst [vmem:[#allocation2 + $0x1f8] sm:$0xff] 0.0
        $region48: #{tpu_custom_call.1} parent=31 // pred_fallthru
          _
        %v347 = vld [vmem:[#allocation8] sm:$0xf]
        %v348 = vld [vmem:[#allocation8 + $0x4] sm:$0xf]
        %v349 = vld [vmem:[#allocation8 + $0x8] sm:$0xf]
        %v350 = vld [vmem:[#allocation8 + $0xc] sm:$0xf]
        %v351 = vld [vmem:[#allocation8 + $0x10] sm:$0xf]
        %v352 = vld [vmem:[#allocation8 + $0x14] sm:$0xf]
        %v353 = vld [vmem:[#allocation8 + $0x18] sm:$0xf]
        %v354 = vld [vmem:[#allocation8 + $0x1c] sm:$0xf]
        %v355 = vld [vmem:[#allocation8 + $0x20] sm:$0xf]
        %v356 = vld [vmem:[#allocation8 + $0x24] sm:$0xf]
        %v357 = vld [vmem:[#allocation8 + $0x28] sm:$0xf]
        %v358 = vld [vmem:[#allocation8 + $0x2c] sm:$0xf]
        %v359 = vld [vmem:[#allocation8 + $0x30] sm:$0xf]
        %v360 = vld [vmem:[#allocation8 + $0x34] sm:$0xf]
        %v361 = vld [vmem:[#allocation8 + $0x38] sm:$0xf]
        %v362 = vld [vmem:[#allocation8 + $0x3c] sm:$0xf]
        %v363 = vld [vmem:[#allocation2] sm:$0xff]
        %v364 = vld [vmem:[#allocation2 + $0x10] sm:$0xff]
        %v365 = vld [vmem:[#allocation2 + $0x20] sm:$0xff]
        %v366 = vld [vmem:[#allocation2 + $0x30] sm:$0xff]
        %v367 = vld [vmem:[#allocation2 + $0x40] sm:$0xff]
        %v368 = vld [vmem:[#allocation2 + $0x50] sm:$0xff]
        %v369 = vld [vmem:[#allocation2 + $0x60] sm:$0xff]
        %v370 = vld [vmem:[#allocation2 + $0x70] sm:$0xff]
        %v371 = vld [vmem:[#allocation2 + $0x80] sm:$0xff]
        %v372 = vld [vmem:[#allocation2 + $0x90] sm:$0xff]
        %v373 = vld [vmem:[#allocation2 + $0xa0] sm:$0xff]
        %v374 = vld [vmem:[#allocation2 + $0xb0] sm:$0xff]
        %v375 = vld [vmem:[#allocation2 + $0xc0] sm:$0xff]
        %v376 = vld [vmem:[#allocation2 + $0xd0] sm:$0xff]
        %v377 = vld [vmem:[#allocation2 + $0xe0] sm:$0xff]
        %v378 = vld [vmem:[#allocation2 + $0xf0] sm:$0xff]
        %v379 = vld [vmem:[#allocation2 + $0x100] sm:$0xff]
        %v380 = vld [vmem:[#allocation2 + $0x110] sm:$0xff]
        %v381 = vld [vmem:[#allocation2 + $0x120] sm:$0xff]
        %v382 = vld [vmem:[#allocation2 + $0x130] sm:$0xff]
        %v383 = vld [vmem:[#allocation2 + $0x140] sm:$0xff]
        %v384 = vld [vmem:[#allocation2 + $0x150] sm:$0xff]
        %v385 = vld [vmem:[#allocation2 + $0x160] sm:$0xff]
        %v386 = vld [vmem:[#allocation2 + $0x170] sm:$0xff]
        %v387 = vld [vmem:[#allocation2 + $0x180] sm:$0xff]
        %v388 = vld [vmem:[#allocation2 + $0x190] sm:$0xff]
        %v389 = vld [vmem:[#allocation2 + $0x1a0] sm:$0xff]
        %v390 = vld [vmem:[#allocation2 + $0x1b0] sm:$0xff]
        %v391 = vld [vmem:[#allocation2 + $0x1c0] sm:$0xff]
        %v392 = vld [vmem:[#allocation2 + $0x1d0] sm:$0xff]
        %v393 = vld [vmem:[#allocation2 + $0x1e0] sm:$0xff]
        %v394 = vld [vmem:[#allocation2 + $0x1f0] sm:$0xff]
        %v395 = vld [vmem:[%s231] sm:$0xf]
        %v396 = vld [vmem:[%s231 + $0x4] sm:$0xf]
        %v397 = vld [vmem:[%s231 + $0x8] sm:$0xf]
        %v398 = vld [vmem:[%s231 + $0xc] sm:$0xf]
        %v399 = vld [vmem:[%s231 + $0x10] sm:$0xf]
        %v400 = vld [vmem:[%s231 + $0x14] sm:$0xf]
        %v401 = vld [vmem:[%s231 + $0x18] sm:$0xf]
        %v402 = vld [vmem:[%s231 + $0x1c] sm:$0xf]
        %v403 = vld [vmem:[%s231 + $0x20] sm:$0xf]
        %v404 = vld [vmem:[%s231 + $0x24] sm:$0xf]
        %v405 = vld [vmem:[%s231 + $0x28] sm:$0xf]
        %v406 = vld [vmem:[%s231 + $0x2c] sm:$0xf]
        %v407 = vld [vmem:[%s231 + $0x30] sm:$0xf]
        %v408 = vld [vmem:[%s231 + $0x34] sm:$0xf]
        %v409 = vld [vmem:[%s231 + $0x38] sm:$0xf]
        %v410 = vld [vmem:[%s231 + $0x3c] sm:$0xf]
        %v411 = vld [vmem:[%s231 + $0x40] sm:$0xf]
        %v412 = vld [vmem:[%s231 + $0x44] sm:$0xf]
        %v413 = vld [vmem:[%s231 + $0x48] sm:$0xf]
        %v414 = vld [vmem:[%s231 + $0x4c] sm:$0xf]
        %v415 = vld [vmem:[%s231 + $0x50] sm:$0xf]
        %v416 = vld [vmem:[%s231 + $0x54] sm:$0xf]
        %v417 = vld [vmem:[%s231 + $0x58] sm:$0xf]
        %v418 = vld [vmem:[%s231 + $0x5c] sm:$0xf]
        %v419 = vld [vmem:[%s231 + $0x60] sm:$0xf]
        %v420 = vld [vmem:[%s231 + $0x64] sm:$0xf]
        %v421 = vld [vmem:[%s231 + $0x68] sm:$0xf]
        %v422 = vld [vmem:[%s231 + $0x6c] sm:$0xf]
        %v423 = vld [vmem:[%s231 + $0x70] sm:$0xf]
        %v424 = vld [vmem:[%s231 + $0x74] sm:$0xf]
        %v425 = vld [vmem:[%s231 + $0x78] sm:$0xf]
        %v426 = vld [vmem:[%s231 + $0x7c] sm:$0xf]
        %v459 = vunpack.c.l.b16 %v395
        %v460 = vunpack.c.l.b16 %v396
        %v461 = vunpack.c.l.b16 %v397
        %v462 = vunpack.c.l.b16 %v398
        %v463 = vunpack.c.l.b16 %v399
        %v464 = vunpack.c.l.b16 %v400
        %v465 = vunpack.c.l.b16 %v401
        %v466 = vunpack.c.l.b16 %v402
        %v467 = vunpack.c.l.b16 %v403
        %v468 = vunpack.c.l.b16 %v404
        %v469 = vunpack.c.l.b16 %v405
        %v470 = vunpack.c.l.b16 %v406
        %v471 = vunpack.c.l.b16 %v407
        %v472 = vunpack.c.l.b16 %v408
        %v473 = vunpack.c.l.b16 %v409
        %v474 = vunpack.c.l.b16 %v410
        %v475 = vunpack.c.l.b16 %v411
        %v476 = vunpack.c.l.b16 %v412
        %v477 = vunpack.c.l.b16 %v413
        %v478 = vunpack.c.l.b16 %v414
        %v479 = vunpack.c.l.b16 %v415
        %v480 = vunpack.c.l.b16 %v416
        %v481 = vunpack.c.l.b16 %v417
        %v482 = vunpack.c.l.b16 %v418
        %v483 = vunpack.c.l.b16 %v419
        %v484 = vunpack.c.l.b16 %v420
        %v485 = vunpack.c.l.b16 %v421
        %v486 = vunpack.c.l.b16 %v422
        %v487 = vunpack.c.l.b16 %v423
        %v488 = vunpack.c.l.b16 %v424
        %v489 = vunpack.c.l.b16 %v425
        %v490 = vunpack.c.l.b16 %v426
        %v491 = vpack.c.b16 %v460, %v459
        %v492 = vpack.c.b16 %v462, %v461
        %v493 = vpack.c.b16 %v464, %v463
        %v494 = vpack.c.b16 %v466, %v465
        %v495 = vpack.c.b16 %v468, %v467
        %v496 = vpack.c.b16 %v470, %v469
        %v497 = vpack.c.b16 %v472, %v471
        %v498 = vpack.c.b16 %v474, %v473
        %v499 = vpack.c.b16 %v476, %v475
        %v500 = vpack.c.b16 %v478, %v477
        %v501 = vpack.c.b16 %v480, %v479
        %v502 = vpack.c.b16 %v482, %v481
        %v503 = vpack.c.b16 %v484, %v483
        %v504 = vpack.c.b16 %v486, %v485
        %v505 = vpack.c.b16 %v488, %v487
        %v506 = vpack.c.b16 %v490, %v489
        %v539 = vunpack.c.l.b16 %v347
        %v540 = vunpack.c.l.b16 %v348
        %v541 = vunpack.c.l.b16 %v349
        %v542 = vunpack.c.l.b16 %v350
        %v543 = vunpack.c.l.b16 %v351
        %v544 = vunpack.c.l.b16 %v352
        %v545 = vunpack.c.l.b16 %v353
        %v546 = vunpack.c.l.b16 %v354
        %v547 = vunpack.c.l.b16 %v355
        %v548 = vunpack.c.l.b16 %v356
        %v549 = vunpack.c.l.b16 %v357
        %v550 = vunpack.c.l.b16 %v358
        %v551 = vunpack.c.l.b16 %v359
        %v552 = vunpack.c.l.b16 %v360
        %v553 = vunpack.c.l.b16 %v361
        %v554 = vunpack.c.l.b16 %v362
        %v555 = vpack.c.b16 %v540, %v539
        %v556 = vpack.c.b16 %v542, %v541
        %v557 = vpack.c.b16 %v544, %v543
        %v558 = vpack.c.b16 %v546, %v545
        %v559 = vpack.c.b16 %v548, %v547
        %v560 = vpack.c.b16 %v550, %v549
        %v561 = vpack.c.b16 %v552, %v551
        %v562 = vpack.c.b16 %v554, %v553
        %571 = vmatpush.bf16.msra.mxu0 %v562
        %572 = vmatpush.bf16.msra.mxu0 %v561
        %573 = vmatpush.bf16.msra.mxu0 %v560
        %574 = vmatpush.bf16.msra.mxu0 %v559
        %575 = vmatpush.bf16.msra.mxu0 %v558
        %576 = vmatpush.bf16.msra.mxu0 %v557
        %577 = vmatpush.bf16.msra.mxu0 %v556
        %578 = vmatpush.bf16.msra.mxu0 %v555
        %579 = vmatmul.bf16.gmra.mxu0 %v491
        %v580 = vpop.f32.mrf.mxu0
        %v581 = vadd.f32 0.0, %v580
        %v582 = vpop.f32.mrf.mxu0
        %v583 = vadd.f32 0.0, %v582
        %584 = vmatmul.bf16.gmra.mxu0 %v492
        %v585 = vpop.f32.mrf.mxu0
        %v586 = vadd.f32 0.0, %v585
        %v587 = vpop.f32.mrf.mxu0
        %v588 = vadd.f32 0.0, %v587
        %589 = vmatmul.bf16.gmra.mxu0 %v493
        %v590 = vpop.f32.mrf.mxu0
        %v591 = vadd.f32 0.0, %v590
        %v592 = vpop.f32.mrf.mxu0
        %v593 = vadd.f32 0.0, %v592
        %594 = vmatmul.bf16.gmra.mxu0 %v494
        %v595 = vpop.f32.mrf.mxu0
        %v596 = vadd.f32 0.0, %v595
        %v597 = vpop.f32.mrf.mxu0
        %v598 = vadd.f32 0.0, %v597
        %599 = vmatmul.bf16.gmra.mxu0 %v495
        %v600 = vpop.f32.mrf.mxu0
        %v601 = vadd.f32 0.0, %v600
        %v602 = vpop.f32.mrf.mxu0
        %v603 = vadd.f32 0.0, %v602
        %604 = vmatmul.bf16.gmra.mxu0 %v496
        %v605 = vpop.f32.mrf.mxu0
        %v606 = vadd.f32 0.0, %v605
        %v607 = vpop.f32.mrf.mxu0
        %v608 = vadd.f32 0.0, %v607
        %609 = vmatmul.bf16.gmra.mxu0 %v497
        %v610 = vpop.f32.mrf.mxu0
        %v611 = vadd.f32 0.0, %v610
        %v612 = vpop.f32.mrf.mxu0
        %v613 = vadd.f32 0.0, %v612
        %614 = vmatmul.bf16.gmra.mxu0 %v498
        %v615 = vpop.f32.mrf.mxu0
        %v616 = vadd.f32 0.0, %v615
        %v617 = vpop.f32.mrf.mxu0
        %v618 = vadd.f32 0.0, %v617
        %619 = vmatmul.bf16.gmra.mxu0 %v499
        %v620 = vpop.f32.mrf.mxu0
        %v621 = vadd.f32 0.0, %v620
        %v622 = vpop.f32.mrf.mxu0
        %v623 = vadd.f32 0.0, %v622
        %624 = vmatmul.bf16.gmra.mxu0 %v500
        %v625 = vpop.f32.mrf.mxu0
        %v626 = vadd.f32 0.0, %v625
        %v627 = vpop.f32.mrf.mxu0
        %v628 = vadd.f32 0.0, %v627
        %629 = vmatmul.bf16.gmra.mxu0 %v501
        %v630 = vpop.f32.mrf.mxu0
        %v631 = vadd.f32 0.0, %v630
        %v632 = vpop.f32.mrf.mxu0
        %v633 = vadd.f32 0.0, %v632
        %634 = vmatmul.bf16.gmra.mxu0 %v502
        %v635 = vpop.f32.mrf.mxu0
        %v636 = vadd.f32 0.0, %v635
        %v637 = vpop.f32.mrf.mxu0
        %v638 = vadd.f32 0.0, %v637
        %639 = vmatmul.bf16.gmra.mxu0 %v503
        %v640 = vpop.f32.mrf.mxu0
        %v641 = vadd.f32 0.0, %v640
        %v642 = vpop.f32.mrf.mxu0
        %v643 = vadd.f32 0.0, %v642
        %644 = vmatmul.bf16.gmra.mxu0 %v504
        %v645 = vpop.f32.mrf.mxu0
        %v646 = vadd.f32 0.0, %v645
        %v647 = vpop.f32.mrf.mxu0
        %v648 = vadd.f32 0.0, %v647
        %649 = vmatmul.bf16.gmra.mxu0 %v505
        %v650 = vpop.f32.mrf.mxu0
        %v651 = vadd.f32 0.0, %v650
        %v652 = vpop.f32.mrf.mxu0
        %v653 = vadd.f32 0.0, %v652
        %654 = vmatmul.bf16.gmra.mxu0 %v506
        %v655 = vpop.f32.mrf.mxu0
        %v656 = vadd.f32 0.0, %v655
        %v657 = vpop.f32.mrf.mxu0
        %v658 = vadd.f32 0.0, %v657
        %659 = vdwg.mxu0
        %v660 = vadd.f32 %v363, %v581
        %v661 = vadd.f32 %v364, %v583
        %v662 = vadd.f32 %v365, %v586
        %v663 = vadd.f32 %v366, %v588
        %v664 = vadd.f32 %v367, %v591
        %v665 = vadd.f32 %v368, %v593
        %v666 = vadd.f32 %v369, %v596
        %v667 = vadd.f32 %v370, %v598
        %v668 = vadd.f32 %v371, %v601
        %v669 = vadd.f32 %v372, %v603
        %v670 = vadd.f32 %v373, %v606
        %v671 = vadd.f32 %v374, %v608
        %v672 = vadd.f32 %v375, %v611
        %v673 = vadd.f32 %v376, %v613
        %v674 = vadd.f32 %v377, %v616
        %v675 = vadd.f32 %v378, %v618
        %v676 = vadd.f32 %v379, %v621
        %v677 = vadd.f32 %v380, %v623
        %v678 = vadd.f32 %v381, %v626
        %v679 = vadd.f32 %v382, %v628
        %v680 = vadd.f32 %v383, %v631
        %v681 = vadd.f32 %v384, %v633
        %v682 = vadd.f32 %v385, %v636
        %v683 = vadd.f32 %v386, %v638
        %v684 = vadd.f32 %v387, %v641
        %v685 = vadd.f32 %v388, %v643
        %v686 = vadd.f32 %v389, %v646
        %v687 = vadd.f32 %v390, %v648
        %v688 = vadd.f32 %v391, %v651
        %v689 = vadd.f32 %v392, %v653
        %v690 = vadd.f32 %v393, %v656
        %v691 = vadd.f32 %v394, %v658
        %692 = vst [vmem:[#allocation2] sm:$0xff] %v660
        %693 = vst [vmem:[#allocation2 + $0x10] sm:$0xff] %v661
        %694 = vst [vmem:[#allocation2 + $0x20] sm:$0xff] %v662
        %695 = vst [vmem:[#allocation2 + $0x30] sm:$0xff] %v663
        %696 = vst [vmem:[#allocation2 + $0x40] sm:$0xff] %v664
        %697 = vst [vmem:[#allocation2 + $0x50] sm:$0xff] %v665
        %698 = vst [vmem:[#allocation2 + $0x60] sm:$0xff] %v666
        %699 = vst [vmem:[#allocation2 + $0x70] sm:$0xff] %v667
        %700 = vst [vmem:[#allocation2 + $0x80] sm:$0xff] %v668
        %701 = vst [vmem:[#allocation2 + $0x90] sm:$0xff] %v669
        %702 = vst [vmem:[#allocation2 + $0xa0] sm:$0xff] %v670
        %703 = vst [vmem:[#allocation2 + $0xb0] sm:$0xff] %v671
        %704 = vst [vmem:[#allocation2 + $0xc0] sm:$0xff] %v672
        %705 = vst [vmem:[#allocation2 + $0xd0] sm:$0xff] %v673
        %706 = vst [vmem:[#allocation2 + $0xe0] sm:$0xff] %v674
        %707 = vst [vmem:[#allocation2 + $0xf0] sm:$0xff] %v675
        %708 = vst [vmem:[#allocation2 + $0x100] sm:$0xff] %v676
        %709 = vst [vmem:[#allocation2 + $0x110] sm:$0xff] %v677
        %710 = vst [vmem:[#allocation2 + $0x120] sm:$0xff] %v678
        %711 = vst [vmem:[#allocation2 + $0x130] sm:$0xff] %v679
        %712 = vst [vmem:[#allocation2 + $0x140] sm:$0xff] %v680
        %713 = vst [vmem:[#allocation2 + $0x150] sm:$0xff] %v681
        %714 = vst [vmem:[#allocation2 + $0x160] sm:$0xff] %v682
        %715 = vst [vmem:[#allocation2 + $0x170] sm:$0xff] %v683
        %716 = vst [vmem:[#allocation2 + $0x180] sm:$0xff] %v684
        %717 = vst [vmem:[#allocation2 + $0x190] sm:$0xff] %v685
        %718 = vst [vmem:[#allocation2 + $0x1a0] sm:$0xff] %v686
        %719 = vst [vmem:[#allocation2 + $0x1b0] sm:$0xff] %v687
        %720 = vst [vmem:[#allocation2 + $0x1c0] sm:$0xff] %v688
        %721 = vst [vmem:[#allocation2 + $0x1d0] sm:$0xff] %v689
        %722 = vst [vmem:[#allocation2 + $0x1e0] sm:$0xff] %v690
        %723 = vst [vmem:[#allocation2 + $0x1f0] sm:$0xff] %v691
        %v724 = vld [vmem:[#allocation2 + $0x8] sm:$0xff]
        %v725 = vld [vmem:[#allocation2 + $0x18] sm:$0xff]
        %v726 = vld [vmem:[#allocation2 + $0x28] sm:$0xff]
        %v727 = vld [vmem:[#allocation2 + $0x38] sm:$0xff]
        %v728 = vld [vmem:[#allocation2 + $0x48] sm:$0xff]
        %v729 = vld [vmem:[#allocation2 + $0x58] sm:$0xff]
        %v730 = vld [vmem:[#allocation2 + $0x68] sm:$0xff]
        %v731 = vld [vmem:[#allocation2 + $0x78] sm:$0xff]
        %v732 = vld [vmem:[#allocation2 + $0x88] sm:$0xff]
        %v733 = vld [vmem:[#allocation2 + $0x98] sm:$0xff]
        %v734 = vld [vmem:[#allocation2 + $0xa8] sm:$0xff]
        %v735 = vld [vmem:[#allocation2 + $0xb8] sm:$0xff]
        %v736 = vld [vmem:[#allocation2 + $0xc8] sm:$0xff]
        %v737 = vld [vmem:[#allocation2 + $0xd8] sm:$0xff]
        %v738 = vld [vmem:[#allocation2 + $0xe8] sm:$0xff]
        %v739 = vld [vmem:[#allocation2 + $0xf8] sm:$0xff]
        %v740 = vld [vmem:[#allocation2 + $0x108] sm:$0xff]
        %v741 = vld [vmem:[#allocation2 + $0x118] sm:$0xff]
        %v742 = vld [vmem:[#allocation2 + $0x128] sm:$0xff]
        %v743 = vld [vmem:[#allocation2 + $0x138] sm:$0xff]
        %v744 = vld [vmem:[#allocation2 + $0x148] sm:$0xff]
        %v745 = vld [vmem:[#allocation2 + $0x158] sm:$0xff]
        %v746 = vld [vmem:[#allocation2 + $0x168] sm:$0xff]
        %v747 = vld [vmem:[#allocation2 + $0x178] sm:$0xff]
        %v748 = vld [vmem:[#allocation2 + $0x188] sm:$0xff]
        %v749 = vld [vmem:[#allocation2 + $0x198] sm:$0xff]
        %v750 = vld [vmem:[#allocation2 + $0x1a8] sm:$0xff]
        %v751 = vld [vmem:[#allocation2 + $0x1b8] sm:$0xff]
        %v752 = vld [vmem:[#allocation2 + $0x1c8] sm:$0xff]
        %v753 = vld [vmem:[#allocation2 + $0x1d8] sm:$0xff]
        %v754 = vld [vmem:[#allocation2 + $0x1e8] sm:$0xff]
        %v755 = vld [vmem:[#allocation2 + $0x1f8] sm:$0xff]
        %v756 = vld [vmem:[%s241] sm:$0xf]
        %v757 = vld [vmem:[%s241 + $0x4] sm:$0xf]
        %v758 = vld [vmem:[%s241 + $0x8] sm:$0xf]
        %v759 = vld [vmem:[%s241 + $0xc] sm:$0xf]
        %v760 = vld [vmem:[%s241 + $0x10] sm:$0xf]
        %v761 = vld [vmem:[%s241 + $0x14] sm:$0xf]
        %v762 = vld [vmem:[%s241 + $0x18] sm:$0xf]
        %v763 = vld [vmem:[%s241 + $0x1c] sm:$0xf]
        %v764 = vld [vmem:[%s241 + $0x20] sm:$0xf]
        %v765 = vld [vmem:[%s241 + $0x24] sm:$0xf]
        %v766 = vld [vmem:[%s241 + $0x28] sm:$0xf]
        %v767 = vld [vmem:[%s241 + $0x2c] sm:$0xf]
        %v768 = vld [vmem:[%s241 + $0x30] sm:$0xf]
        %v769 = vld [vmem:[%s241 + $0x34] sm:$0xf]
        %v770 = vld [vmem:[%s241 + $0x38] sm:$0xf]
        %v771 = vld [vmem:[%s241 + $0x3c] sm:$0xf]
        %v772 = vld [vmem:[%s241 + $0x40] sm:$0xf]
        %v773 = vld [vmem:[%s241 + $0x44] sm:$0xf]
        %v774 = vld [vmem:[%s241 + $0x48] sm:$0xf]
        %v775 = vld [vmem:[%s241 + $0x4c] sm:$0xf]
        %v776 = vld [vmem:[%s241 + $0x50] sm:$0xf]
        %v777 = vld [vmem:[%s241 + $0x54] sm:$0xf]
        %v778 = vld [vmem:[%s241 + $0x58] sm:$0xf]
        %v779 = vld [vmem:[%s241 + $0x5c] sm:$0xf]
        %v780 = vld [vmem:[%s241 + $0x60] sm:$0xf]
        %v781 = vld [vmem:[%s241 + $0x64] sm:$0xf]
        %v782 = vld [vmem:[%s241 + $0x68] sm:$0xf]
        %v783 = vld [vmem:[%s241 + $0x6c] sm:$0xf]
        %v784 = vld [vmem:[%s241 + $0x70] sm:$0xf]
        %v785 = vld [vmem:[%s241 + $0x74] sm:$0xf]
        %v786 = vld [vmem:[%s241 + $0x78] sm:$0xf]
        %v787 = vld [vmem:[%s241 + $0x7c] sm:$0xf]
        %v820 = vunpack.c.l.b16 %v756
        %v821 = vunpack.c.l.b16 %v757
        %v822 = vunpack.c.l.b16 %v758
        %v823 = vunpack.c.l.b16 %v759
        %v824 = vunpack.c.l.b16 %v760
        %v825 = vunpack.c.l.b16 %v761
        %v826 = vunpack.c.l.b16 %v762
        %v827 = vunpack.c.l.b16 %v763
        %v828 = vunpack.c.l.b16 %v764
        %v829 = vunpack.c.l.b16 %v765
        %v830 = vunpack.c.l.b16 %v766
        %v831 = vunpack.c.l.b16 %v767
        %v832 = vunpack.c.l.b16 %v768
        %v833 = vunpack.c.l.b16 %v769
        %v834 = vunpack.c.l.b16 %v770
        %v835 = vunpack.c.l.b16 %v771
        %v836 = vunpack.c.l.b16 %v772
        %v837 = vunpack.c.l.b16 %v773
        %v838 = vunpack.c.l.b16 %v774
        %v839 = vunpack.c.l.b16 %v775
        %v840 = vunpack.c.l.b16 %v776
        %v841 = vunpack.c.l.b16 %v777
        %v842 = vunpack.c.l.b16 %v778
        %v843 = vunpack.c.l.b16 %v779
        %v844 = vunpack.c.l.b16 %v780
        %v845 = vunpack.c.l.b16 %v781
        %v846 = vunpack.c.l.b16 %v782
        %v847 = vunpack.c.l.b16 %v783
        %v848 = vunpack.c.l.b16 %v784
        %v849 = vunpack.c.l.b16 %v785
        %v850 = vunpack.c.l.b16 %v786
        %v851 = vunpack.c.l.b16 %v787
        %v852 = vpack.c.b16 %v821, %v820
        %v853 = vpack.c.b16 %v823, %v822
        %v854 = vpack.c.b16 %v825, %v824
        %v855 = vpack.c.b16 %v827, %v826
        %v856 = vpack.c.b16 %v829, %v828
        %v857 = vpack.c.b16 %v831, %v830
        %v858 = vpack.c.b16 %v833, %v832
        %v859 = vpack.c.b16 %v835, %v834
        %v860 = vpack.c.b16 %v837, %v836
        %v861 = vpack.c.b16 %v839, %v838
        %v862 = vpack.c.b16 %v841, %v840
        %v863 = vpack.c.b16 %v843, %v842
        %v864 = vpack.c.b16 %v845, %v844
        %v865 = vpack.c.b16 %v847, %v846
        %v866 = vpack.c.b16 %v849, %v848
        %v867 = vpack.c.b16 %v851, %v850
        %884 = vmatpush.bf16.msra.mxu0 %v562
        %885 = vmatpush.bf16.msra.mxu0 %v561
        %886 = vmatpush.bf16.msra.mxu0 %v560
        %887 = vmatpush.bf16.msra.mxu0 %v559
        %888 = vmatpush.bf16.msra.mxu0 %v558
        %889 = vmatpush.bf16.msra.mxu0 %v557
        %890 = vmatpush.bf16.msra.mxu0 %v556
        %891 = vmatpush.bf16.msra.mxu0 %v555
        %892 = vmatmul.bf16.gmra.mxu0 %v852
        %v893 = vpop.f32.mrf.mxu0
        %v894 = vadd.f32 0.0, %v893
        %v895 = vpop.f32.mrf.mxu0
        %v896 = vadd.f32 0.0, %v895
        %897 = vmatmul.bf16.gmra.mxu0 %v853
        %v898 = vpop.f32.mrf.mxu0
        %v899 = vadd.f32 0.0, %v898
        %v900 = vpop.f32.mrf.mxu0
        %v901 = vadd.f32 0.0, %v900
        %902 = vmatmul.bf16.gmra.mxu0 %v854
        %v903 = vpop.f32.mrf.mxu0
        %v904 = vadd.f32 0.0, %v903
        %v905 = vpop.f32.mrf.mxu0
        %v906 = vadd.f32 0.0, %v905
        %907 = vmatmul.bf16.gmra.mxu0 %v855
        %v908 = vpop.f32.mrf.mxu0
        %v909 = vadd.f32 0.0, %v908
        %v910 = vpop.f32.mrf.mxu0
        %v911 = vadd.f32 0.0, %v910
        %912 = vmatmul.bf16.gmra.mxu0 %v856
        %v913 = vpop.f32.mrf.mxu0
        %v914 = vadd.f32 0.0, %v913
        %v915 = vpop.f32.mrf.mxu0
        %v916 = vadd.f32 0.0, %v915
        %917 = vmatmul.bf16.gmra.mxu0 %v857
        %v918 = vpop.f32.mrf.mxu0
        %v919 = vadd.f32 0.0, %v918
        %v920 = vpop.f32.mrf.mxu0
        %v921 = vadd.f32 0.0, %v920
        %922 = vmatmul.bf16.gmra.mxu0 %v858
        %v923 = vpop.f32.mrf.mxu0
        %v924 = vadd.f32 0.0, %v923
        %v925 = vpop.f32.mrf.mxu0
        %v926 = vadd.f32 0.0, %v925
        %927 = vmatmul.bf16.gmra.mxu0 %v859
        %v928 = vpop.f32.mrf.mxu0
        %v929 = vadd.f32 0.0, %v928
        %v930 = vpop.f32.mrf.mxu0
        %v931 = vadd.f32 0.0, %v930
        %932 = vmatmul.bf16.gmra.mxu0 %v860
        %v933 = vpop.f32.mrf.mxu0
        %v934 = vadd.f32 0.0, %v933
        %v935 = vpop.f32.mrf.mxu0
        %v936 = vadd.f32 0.0, %v935
        %937 = vmatmul.bf16.gmra.mxu0 %v861
        %v938 = vpop.f32.mrf.mxu0
        %v939 = vadd.f32 0.0, %v938
        %v940 = vpop.f32.mrf.mxu0
        %v941 = vadd.f32 0.0, %v940
        %942 = vmatmul.bf16.gmra.mxu0 %v862
        %v943 = vpop.f32.mrf.mxu0
        %v944 = vadd.f32 0.0, %v943
        %v945 = vpop.f32.mrf.mxu0
        %v946 = vadd.f32 0.0, %v945
        %947 = vmatmul.bf16.gmra.mxu0 %v863
        %v948 = vpop.f32.mrf.mxu0
        %v949 = vadd.f32 0.0, %v948
        %v950 = vpop.f32.mrf.mxu0
        %v951 = vadd.f32 0.0, %v950
        %952 = vmatmul.bf16.gmra.mxu0 %v864
        %v953 = vpop.f32.mrf.mxu0
        %v954 = vadd.f32 0.0, %v953
        %v955 = vpop.f32.mrf.mxu0
        %v956 = vadd.f32 0.0, %v955
        %957 = vmatmul.bf16.gmra.mxu0 %v865
        %v958 = vpop.f32.mrf.mxu0
        %v959 = vadd.f32 0.0, %v958
        %v960 = vpop.f32.mrf.mxu0
        %v961 = vadd.f32 0.0, %v960
        %962 = vmatmul.bf16.gmra.mxu0 %v866
        %v963 = vpop.f32.mrf.mxu0
        %v964 = vadd.f32 0.0, %v963
        %v965 = vpop.f32.mrf.mxu0
        %v966 = vadd.f32 0.0, %v965
        %967 = vmatmul.bf16.gmra.mxu0 %v867
        %v968 = vpop.f32.mrf.mxu0
        %v969 = vadd.f32 0.0, %v968
        %v970 = vpop.f32.mrf.mxu0
        %v971 = vadd.f32 0.0, %v970
        %972 = vdwg.mxu0
        %v973 = vadd.f32 %v724, %v894
        %v974 = vadd.f32 %v725, %v896
        %v975 = vadd.f32 %v726, %v899
        %v976 = vadd.f32 %v727, %v901
        %v977 = vadd.f32 %v728, %v904
        %v978 = vadd.f32 %v729, %v906
        %v979 = vadd.f32 %v730, %v909
        %v980 = vadd.f32 %v731, %v911
        %v981 = vadd.f32 %v732, %v914
        %v982 = vadd.f32 %v733, %v916
        %v983 = vadd.f32 %v734, %v919
        %v984 = vadd.f32 %v735, %v921
        %v985 = vadd.f32 %v736, %v924
        %v986 = vadd.f32 %v737, %v926
        %v987 = vadd.f32 %v738, %v929
        %v988 = vadd.f32 %v739, %v931
        %v989 = vadd.f32 %v740, %v934
        %v990 = vadd.f32 %v741, %v936
        %v991 = vadd.f32 %v742, %v939
        %v992 = vadd.f32 %v743, %v941
        %v993 = vadd.f32 %v744, %v944
        %v994 = vadd.f32 %v745, %v946
        %v995 = vadd.f32 %v746, %v949
        %v996 = vadd.f32 %v747, %v951
        %v997 = vadd.f32 %v748, %v954
        %v998 = vadd.f32 %v749, %v956
        %v999 = vadd.f32 %v750, %v959
        %v1000 = vadd.f32 %v751, %v961
        %v1001 = vadd.f32 %v752, %v964
        %v1002 = vadd.f32 %v753, %v966
        %v1003 = vadd.f32 %v754, %v969
        %v1004 = vadd.f32 %v755, %v971
        %1005 = vst [vmem:[#allocation2 + $0x8] sm:$0xff] %v973
        %1006 = vst [vmem:[#allocation2 + $0x18] sm:$0xff] %v974
        %1007 = vst [vmem:[#allocation2 + $0x28] sm:$0xff] %v975
        %1008 = vst [vmem:[#allocation2 + $0x38] sm:$0xff] %v976
        %1009 = vst [vmem:[#allocation2 + $0x48] sm:$0xff] %v977
        %1010 = vst [vmem:[#allocation2 + $0x58] sm:$0xff] %v978
        %1011 = vst [vmem:[#allocation2 + $0x68] sm:$0xff] %v979
        %1012 = vst [vmem:[#allocation2 + $0x78] sm:$0xff] %v980
        %1013 = vst [vmem:[#allocation2 + $0x88] sm:$0xff] %v981
        %1014 = vst [vmem:[#allocation2 + $0x98] sm:$0xff] %v982
        %1015 = vst [vmem:[#allocation2 + $0xa8] sm:$0xff] %v983
        %1016 = vst [vmem:[#allocation2 + $0xb8] sm:$0xff] %v984
        %1017 = vst [vmem:[#allocation2 + $0xc8] sm:$0xff] %v985
        %1018 = vst [vmem:[#allocation2 + $0xd8] sm:$0xff] %v986
        %1019 = vst [vmem:[#allocation2 + $0xe8] sm:$0xff] %v987
        %1020 = vst [vmem:[#allocation2 + $0xf8] sm:$0xff] %v988
        %1021 = vst [vmem:[#allocation2 + $0x108] sm:$0xff] %v989
        %1022 = vst [vmem:[#allocation2 + $0x118] sm:$0xff] %v990
        %1023 = vst [vmem:[#allocation2 + $0x128] sm:$0xff] %v991
        %1024 = vst [vmem:[#allocation2 + $0x138] sm:$0xff] %v992
        %1025 = vst [vmem:[#allocation2 + $0x148] sm:$0xff] %v993
        %1026 = vst [vmem:[#allocation2 + $0x158] sm:$0xff] %v994
        %1027 = vst [vmem:[#allocation2 + $0x168] sm:$0xff] %v995
        %1028 = vst [vmem:[#allocation2 + $0x178] sm:$0xff] %v996
        %1029 = vst [vmem:[#allocation2 + $0x188] sm:$0xff] %v997
        %1030 = vst [vmem:[#allocation2 + $0x198] sm:$0xff] %v998
        %1031 = vst [vmem:[#allocation2 + $0x1a8] sm:$0xff] %v999
        %1032 = vst [vmem:[#allocation2 + $0x1b8] sm:$0xff] %v1000
        %1033 = vst [vmem:[#allocation2 + $0x1c8] sm:$0xff] %v1001
        %1034 = vst [vmem:[#allocation2 + $0x1d8] sm:$0xff] %v1002
        %1035 = vst [vmem:[#allocation2 + $0x1e8] sm:$0xff] %v1003
        %1036 = vst [vmem:[#allocation2 + $0x1f8] sm:$0xff] %v1004
        // Predicated region
        $region49: #{tpu_custom_call.1} parent=31 // pred_check
          %p1037 = pneg %p279
        $region50: #{tpu_custom_call.1} parent=31 // pred_check_branch
          %1039 = sbr.rel (%p1037) target = $region52
        $region51: #{tpu_custom_call.1} parent=31 // pred_region
          %v1040 = vld [vmem:[#allocation2] sm:$0xff]
          %v1041 = vld [vmem:[#allocation2 + $0x8] sm:$0xff]
          %v1042 = vld [vmem:[#allocation2 + $0x10] sm:$0xff]
          %v1043 = vld [vmem:[#allocation2 + $0x18] sm:$0xff]
          %v1044 = vld [vmem:[#allocation2 + $0x20] sm:$0xff]
          %v1045 = vld [vmem:[#allocation2 + $0x28] sm:$0xff]
          %v1046 = vld [vmem:[#allocation2 + $0x30] sm:$0xff]
          %v1047 = vld [vmem:[#allocation2 + $0x38] sm:$0xff]
          %v1048 = vld [vmem:[#allocation2 + $0x40] sm:$0xff]
          %v1049 = vld [vmem:[#allocation2 + $0x48] sm:$0xff]
          %v1050 = vld [vmem:[#allocation2 + $0x50] sm:$0xff]
          %v1051 = vld [vmem:[#allocation2 + $0x58] sm:$0xff]
          %v1052 = vld [vmem:[#allocation2 + $0x60] sm:$0xff]
          %v1053 = vld [vmem:[#allocation2 + $0x68] sm:$0xff]
          %v1054 = vld [vmem:[#allocation2 + $0x70] sm:$0xff]
          %v1055 = vld [vmem:[#allocation2 + $0x78] sm:$0xff]
          %v1056 = vld [vmem:[#allocation2 + $0x80] sm:$0xff]
          %v1057 = vld [vmem:[#allocation2 + $0x88] sm:$0xff]
          %v1058 = vld [vmem:[#allocation2 + $0x90] sm:$0xff]
          %v1059 = vld [vmem:[#allocation2 + $0x98] sm:$0xff]
          %v1060 = vld [vmem:[#allocation2 + $0xa0] sm:$0xff]
          %v1061 = vld [vmem:[#allocation2 + $0xa8] sm:$0xff]
          %v1062 = vld [vmem:[#allocation2 + $0xb0] sm:$0xff]
          %v1063 = vld [vmem:[#allocation2 + $0xb8] sm:$0xff]
          %v1064 = vld [vmem:[#allocation2 + $0xc0] sm:$0xff]
          %v1065 = vld [vmem:[#allocation2 + $0xc8] sm:$0xff]
          %v1066 = vld [vmem:[#allocation2 + $0xd0] sm:$0xff]
          %v1067 = vld [vmem:[#allocation2 + $0xd8] sm:$0xff]
          %v1068 = vld [vmem:[#allocation2 + $0xe0] sm:$0xff]
          %v1069 = vld [vmem:[#allocation2 + $0xe8] sm:$0xff]
          %v1070 = vld [vmem:[#allocation2 + $0xf0] sm:$0xff]
          %v1071 = vld [vmem:[#allocation2 + $0xf8] sm:$0xff]
          %v1072 = vld [vmem:[#allocation2 + $0x100] sm:$0xff]
          %v1073 = vld [vmem:[#allocation2 + $0x108] sm:$0xff]
          %v1074 = vld [vmem:[#allocation2 + $0x110] sm:$0xff]
          %v1075 = vld [vmem:[#allocation2 + $0x118] sm:$0xff]
          %v1076 = vld [vmem:[#allocation2 + $0x120] sm:$0xff]
          %v1077 = vld [vmem:[#allocation2 + $0x128] sm:$0xff]
          %v1078 = vld [vmem:[#allocation2 + $0x130] sm:$0xff]
          %v1079 = vld [vmem:[#allocation2 + $0x138] sm:$0xff]
          %v1080 = vld [vmem:[#allocation2 + $0x140] sm:$0xff]
          %v1081 = vld [vmem:[#allocation2 + $0x148] sm:$0xff]
          %v1082 = vld [vmem:[#allocation2 + $0x150] sm:$0xff]
          %v1083 = vld [vmem:[#allocation2 + $0x158] sm:$0xff]
          %v1084 = vld [vmem:[#allocation2 + $0x160] sm:$0xff]
          %v1085 = vld [vmem:[#allocation2 + $0x168] sm:$0xff]
          %v1086 = vld [vmem:[#allocation2 + $0x170] sm:$0xff]
          %v1087 = vld [vmem:[#allocation2 + $0x178] sm:$0xff]
          %v1088 = vld [vmem:[#allocation2 + $0x180] sm:$0xff]
          %v1089 = vld [vmem:[#allocation2 + $0x188] sm:$0xff]
          %v1090 = vld [vmem:[#allocation2 + $0x190] sm:$0xff]
          %v1091 = vld [vmem:[#allocation2 + $0x198] sm:$0xff]
          %v1092 = vld [vmem:[#allocation2 + $0x1a0] sm:$0xff]
          %v1093 = vld [vmem:[#allocation2 + $0x1a8] sm:$0xff]
          %v1094 = vld [vmem:[#allocation2 + $0x1b0] sm:$0xff]
          %v1095 = vld [vmem:[#allocation2 + $0x1b8] sm:$0xff]
          %v1096 = vld [vmem:[#allocation2 + $0x1c0] sm:$0xff]
          %v1097 = vld [vmem:[#allocation2 + $0x1c8] sm:$0xff]
          %v1098 = vld [vmem:[#allocation2 + $0x1d0] sm:$0xff]
          %v1099 = vld [vmem:[#allocation2 + $0x1d8] sm:$0xff]
          %v1100 = vld [vmem:[#allocation2 + $0x1e0] sm:$0xff]
          %v1101 = vld [vmem:[#allocation2 + $0x1e8] sm:$0xff]
          %v1102 = vld [vmem:[#allocation2 + $0x1f0] sm:$0xff]
          %v1103 = vld [vmem:[#allocation2 + $0x1f8] sm:$0xff]
          %v1104 = vpack.c.bf16 %v1041, %v1040
          %v1105 = vpack.c.bf16 %v1043, %v1042
          %v1106 = vpack.c.bf16 %v1045, %v1044
          %v1107 = vpack.c.bf16 %v1047, %v1046
          %v1108 = vpack.c.bf16 %v1049, %v1048
          %v1109 = vpack.c.bf16 %v1051, %v1050
          %v1110 = vpack.c.bf16 %v1053, %v1052
          %v1111 = vpack.c.bf16 %v1055, %v1054
          %v1112 = vpack.c.bf16 %v1057, %v1056
          %v1113 = vpack.c.bf16 %v1059, %v1058
          %v1114 = vpack.c.bf16 %v1061, %v1060
          %v1115 = vpack.c.bf16 %v1063, %v1062
          %v1116 = vpack.c.bf16 %v1065, %v1064
          %v1117 = vpack.c.bf16 %v1067, %v1066
          %v1118 = vpack.c.bf16 %v1069, %v1068
          %v1119 = vpack.c.bf16 %v1071, %v1070
          %v1120 = vpack.c.bf16 %v1073, %v1072
          %v1121 = vpack.c.bf16 %v1075, %v1074
          %v1122 = vpack.c.bf16 %v1077, %v1076
          %v1123 = vpack.c.bf16 %v1079, %v1078
          %v1124 = vpack.c.bf16 %v1081, %v1080
          %v1125 = vpack.c.bf16 %v1083, %v1082
          %v1126 = vpack.c.bf16 %v1085, %v1084
          %v1127 = vpack.c.bf16 %v1087, %v1086
          %v1128 = vpack.c.bf16 %v1089, %v1088
          %v1129 = vpack.c.bf16 %v1091, %v1090
          %v1130 = vpack.c.bf16 %v1093, %v1092
          %v1131 = vpack.c.bf16 %v1095, %v1094
          %v1132 = vpack.c.bf16 %v1097, %v1096
          %v1133 = vpack.c.bf16 %v1099, %v1098
          %v1134 = vpack.c.bf16 %v1101, %v1100
          %v1135 = vpack.c.bf16 %v1103, %v1102
          %1136 = vst [vmem:[%s274] sm:$0xff] %v1104
          %1137 = vst [vmem:[%s274 + $0x8] sm:$0xff] %v1105
          %1138 = vst [vmem:[%s274 + $0x10] sm:$0xff] %v1106
          %1139 = vst [vmem:[%s274 + $0x18] sm:$0xff] %v1107
          %1140 = vst [vmem:[%s274 + $0x20] sm:$0xff] %v1108
          %1141 = vst [vmem:[%s274 + $0x28] sm:$0xff] %v1109
          %1142 = vst [vmem:[%s274 + $0x30] sm:$0xff] %v1110
          %1143 = vst [vmem:[%s274 + $0x38] sm:$0xff] %v1111
          %1144 = vst [vmem:[%s274 + $0x40] sm:$0xff] %v1112
          %1145 = vst [vmem:[%s274 + $0x48] sm:$0xff] %v1113
          %1146 = vst [vmem:[%s274 + $0x50] sm:$0xff] %v1114
          %1147 = vst [vmem:[%s274 + $0x58] sm:$0xff] %v1115
          %1148 = vst [vmem:[%s274 + $0x60] sm:$0xff] %v1116
          %1149 = vst [vmem:[%s274 + $0x68] sm:$0xff] %v1117
          %1150 = vst [vmem:[%s274 + $0x70] sm:$0xff] %v1118
          %1151 = vst [vmem:[%s274 + $0x78] sm:$0xff] %v1119
          %1152 = vst [vmem:[%s274 + $0x80] sm:$0xff] %v1120
          %1153 = vst [vmem:[%s274 + $0x88] sm:$0xff] %v1121
          %1154 = vst [vmem:[%s274 + $0x90] sm:$0xff] %v1122
          %1155 = vst [vmem:[%s274 + $0x98] sm:$0xff] %v1123
          %1156 = vst [vmem:[%s274 + $0xa0] sm:$0xff] %v1124
          %1157 = vst [vmem:[%s274 + $0xa8] sm:$0xff] %v1125
          %1158 = vst [vmem:[%s274 + $0xb0] sm:$0xff] %v1126
          %1159 = vst [vmem:[%s274 + $0xb8] sm:$0xff] %v1127
          %1160 = vst [vmem:[%s274 + $0xc0] sm:$0xff] %v1128
          %1161 = vst [vmem:[%s274 + $0xc8] sm:$0xff] %v1129
          %1162 = vst [vmem:[%s274 + $0xd0] sm:$0xff] %v1130
          %1163 = vst [vmem:[%s274 + $0xd8] sm:$0xff] %v1131
          %1164 = vst [vmem:[%s274 + $0xe0] sm:$0xff] %v1132
          %1165 = vst [vmem:[%s274 + $0xe8] sm:$0xff] %v1133
          %1166 = vst [vmem:[%s274 + $0xf0] sm:$0xff] %v1134
          %1167 = vst [vmem:[%s274 + $0xf8] sm:$0xff] %v1135
        $region52: #{tpu_custom_call.1} parent=31 // pred_fallthru
          _
        %s1168 = sand.u32 %s125, 1
        %s1169 = scalar_lea.sflag [#allocation5], %s1168
        %s1170 = sand.u32 %s125, 1
        %s1171 = smul.addr %s1170, 256
        %s1172 = scalar_lea.vmem [#allocation9], %s1171
        // Predicated region
        $region53: #{tpu_custom_call.1} parent=31 // pred_check
          %p1173 = pneg %p135
        $region54: #{tpu_custom_call.1} parent=31 // pred_check_branch
          %1175 = sbr.rel (%p1173) target = $region56
        $region55: #{tpu_custom_call.1} parent=31 // pred_region
          %s1176 = smul.u32 32, %s27
          %1178 = vsyncadd %s1169, 0
          %s1179 = smul.addr %s1176, 2
          %s1180 = smul.addr %s1179, 4
          %s1181 = scalar_lea.hbm %s3, %s1180
          %s1182 = sshll.u32 %s1172, 4
          %s1183 = int_to_ptr.vmem [resolvable:$true] %s1182
          %s1184 = sshll.u32 %s1181, 4
          %s1185 = int_to_ptr.hbm [resolvable:$true] %s1184
          %1190 = dma.vmem_to_hbm [thread:$0]  %s1183, 4096, %s1185, %s1169, 128, 128, 8
        $region56: #{tpu_custom_call.1} parent=31 // pred_fallthru
          _
      $region32: #{tpu_custom_call.1} parent=5 // pred_fallthru
        _
      %p1191 = scmp.le.s32.totalorder 2, %s18
      // Predicated region
      $region57: #{tpu_custom_call.1} parent=5 // pred_check
        %p1192 = pneg %p1191
      $region58: #{tpu_custom_call.1} parent=5 // pred_check_branch
        %1194 = sbr.rel (%p1192) target = $region60
      $region59: #{tpu_custom_call.1} parent=5 // pred_region
        %s1195 = ssub.s32 %s18, 2
        // Predicated region
        $region61: #{tpu_custom_call.1} parent=59 // pred_check
          %p1196 = pneg %p141
        $region62: #{tpu_custom_call.1} parent=59 // pred_check_branch
          %1198 = sbr.rel (%p1196) target = $region64
        $region63: #{tpu_custom_call.1} parent=59 // pred_region
          %s1199 = sand.u32 %s126, 1
          %s1200 = scalar_lea.sflag [#allocation5], %s1199
          %s1201 = sand.u32 %s126, 1
          %s1202 = smul.addr %s1201, 256
          %s1203 = scalar_lea.vmem [#allocation9], %s1202
          %1205 = dma.done %s1200, 4096
        $region64: #{tpu_custom_call.1} parent=59 // pred_fallthru
          _
      $region60: #{tpu_custom_call.1} parent=5 // pred_fallthru
        _
    $region6: #{tpu_custom_call.1} parent=1 // loop_footer
      %s22 = sadd.s32 1, %s18
    $region7: #{tpu_custom_call.1} parent=1 // loop_footer_branch
      %17 = sbr.rel target = $region3
    $region8: #{tpu_custom_call.1} parent=1 // loop_exit
      _
    %1206 = vsyncpa [#allocation4], 1
    %s1207 = scalar_lea.sflag [#allocation4], 1
    %1208 = vsyncpa %s1207, 1
    %1209 = vsyncpa [#allocation7], 1
    %s1210 = scalar_lea.sflag [#allocation7], 1
    %1211 = vsyncpa %s1210, 1
    %1212 = vsyncpa [#allocation5], 1
    %s1213 = scalar_lea.sflag [#allocation5], 1
    %1214 = vsyncpa %s1213, 1

</llo_original>
